<compile_context>
chip_gen: v7x
topology: tpu7x:2x2x1
jax: 0.10.0
libtpu: 0.0.40
codegen_flags: <defaults>
</compile_context>

<pallas_src>
import jax
import jax.numpy as jnp
from jax import lax
from jax.experimental import pallas as pl
from jax.experimental.pallas import tpu as pltpu


def _round_up(x, m):
    return (x + m - 1) // m * m


# ---------------------------------------------------------------------------
# Kernel
# ---------------------------------------------------------------------------
def avg_readout_kernel(mask_ref, emb_ref, o_ref, rs_ref):
    """grid = (M/tm, N/tk); axis 1 (nodes) is the reduction axis.

    o_ref is the resident f32 output block and doubles as the vsum
    accumulator; rs_ref is the per-row mask-sum accumulator.
    """
    k = pl.program_id(1)

    @pl.when(k == 0)
    def _():
        o_ref[...] = jnp.zeros_like(o_ref)
        rs_ref[...] = jnp.zeros_like(rs_ref)

    # mask arrives as bf16 (halves HBM traffic of the dominant N^2 operand);
    # cast once, reuse for both the MXU matmul and the row-sum reduction.
    m = mask_ref[...].astype(jnp.float32)
    o_ref[...] += jnp.dot(m, emb_ref[...], preferred_element_type=jnp.float32)
    rs_ref[...] += jnp.sum(m, axis=1, keepdims=True)

    @pl.when(k == pl.num_programs(1) - 1)
    def _():
        # global_emb = vsum / row_sum.  row_sum is a positive per-row scalar,
        # so the approximate-reciprocal error cancels in the L2 normalization.
        # The tiny clamp only changes behavior for degenerate all-zero mask
        # rows (NaN in the PyTorch reference) and for zero-padded rows.
        inv_rs = pl.reciprocal(jnp.maximum(rs_ref[...], 1e-30), approx=True)
        g = o_ref[...] * inv_rs
        # F.normalize(p=2, dim=1, eps=1e-12):  x / max(||x||_2, eps)
        # sqrt(max(ssq, eps^2)) == max(sqrt(ssq), eps), so this matches exactly.
        ssq = jnp.sum(g * g, axis=1, keepdims=True)
        o_ref[...] = g * lax.rsqrt(jnp.maximum(ssq, 1e-24))


# ---------------------------------------------------------------------------
# Wrapper
# ---------------------------------------------------------------------------
def avg_readout(mask, emb, *, tm=512, tk=1024):
    """Pallas AvgReadout.  mask: (M, N), emb: (N, F) -> (M, F) float32."""
    M, N = mask.shape
    N2, F = emb.shape
    assert N == N2, "mask columns must match emb rows"

    # Lane-dense feature axis: pad F up to a multiple of 128 (zero columns do
    # not change vsum or the L2 norm); slice back after the call.
    Fp = max(_round_up(F, 128), 128)
    # Shrink tiles for small inputs while keeping (8, 128) divisibility.
    tm = min(tm, _round_up(M, 8))
    tk = min(tk, _round_up(N, 128))
    Mp = _round_up(M, tm)
    Np = _round_up(N, tk)

    # Padded operands.  Zero mask columns / zero emb rows contribute nothing
    # to vsum or row_sum, so results for the real rows are unchanged.
    mask_p = jnp.zeros((Mp, Np), jnp.bfloat16).at[:M, :N].set(
        mask.astype(jnp.bfloat16))
    emb_p = jnp.zeros((Np, Fp), jnp.float32).at[:N, :F].set(
        emb.astype(jnp.float32))

    grid = (Mp // tm, Np // tk)

    # Scoped-VMEM budget for this tile choice (double-buffered inputs/output
    # + resident row-sum scratch) with 2x headroom, clamped well under every
    # chip's physical VMEM (v7x has only 64 MiB).
    vmem_bytes = (
        2 * tm * tk * 2        # mask tiles   (bf16, double-buffered)
        + 2 * tk * Fp * 4      # emb tiles    (f32,  double-buffered)
        + 2 * tm * Fp * 4      # output tiles (f32,  double-buffered)
        + tm * 128 * 4         # row-sum scratch (lane-padded)
    )
    vmem_limit = min(max(2 * vmem_bytes, 16 * 1024 * 1024), 48 * 1024 * 1024)

    out = pl.pallas_call(
        avg_readout_kernel,
        out_shape=jax.ShapeDtypeStruct((Mp, Fp), jnp.float32),
        grid_spec=pltpu.PrefetchScalarGridSpec(
            num_scalar_prefetch=0,
            grid=grid,
            in_specs=[
                pl.BlockSpec((tm, tk), lambda i, k: (i, k)),   # mask tile
                pl.BlockSpec((tk, Fp), lambda i, k: (k, 0)),   # emb tile
            ],
            out_specs=pl.BlockSpec((tm, Fp), lambda i, k: (i, 0)),
            scratch_shapes=[
                pltpu.VMEM((tm, 1), jnp.float32),    # row_sum accumulator
            ],
        ),
        compiler_params=pltpu.CompilerParams(
            dimension_semantics=("parallel", "arbitrary"),
            vmem_limit_bytes=vmem_limit,
        ),
    )(mask_p, emb_p)
    return out[:M, :F]


# ---------------------------------------------------------------------------
# Pure-JAX reference (mirrors the PyTorch forward exactly)
# ---------------------------------------------------------------------------
def avg_readout_ref(mask, emb):
    vsum = mask @ emb
    row_sum = jnp.sum(mask, axis=1, keepdims=True)
    g = vsum / row_sum
    nrm = jnp.sqrt(jnp.sum(g * g, axis=1, keepdims=True))
    return g / jnp.maximum(nrm, 1e-12)


# ---------------------------------------------------------------------------
if __name__ == "__main__":
    key = jax.random.PRNGKey(0)
    k1, k2, k3, k4 = jax.random.split(key, 4)

    # Small shapes consistent with the module: N nodes, F-dim embeddings,
    # binary neighborhood mask with self-loops (as the model uses graph_neigh).
    N, F = 8, 16
    emb = jax.random.normal(k1, (N, F), jnp.float32)
    mask = (jax.random.uniform(k2, (N, N)) < 0.4).astype(jnp.float32)
    mask = mask.at[jnp.arange(N), jnp.arange(N)].set(1.0)

    out = avg_readout(mask, emb)
    jax.block_until_ready(out)
    ref = avg_readout_ref(mask, emb)
    assert out.shape == (N, F)
    assert jnp.allclose(out, ref, atol=1e-4, rtol=1e-4), float(
        jnp.max(jnp.abs(out - ref)))

    # Second case that exercises the tiled grid, the k-reduction accumulator
    # and the row/column/feature zero-padding paths.
    N2, F2 = 300, 33
    emb2 = jax.random.normal(k3, (N2, F2), jnp.float32)
    mask2 = (jax.random.uniform(k4, (N2, N2)) < 0.05).astype(jnp.float32)
    mask2 = mask2.at[jnp.arange(N2), jnp.arange(N2)].set(1.0)

    out2 = avg_readout(mask2, emb2, tm=128, tk=128)   # grid (3, 3)
    jax.block_until_ready(out2)
    ref2 = avg_readout_ref(mask2, emb2)
    assert out2.shape == (N2, F2)
    assert jnp.allclose(out2, ref2, atol=1e-4, rtol=1e-4), float(
        jnp.max(jnp.abs(out2 - ref2)))

    print("KERNEL_OK")
</pallas_src>

<mosaic_0001>
module attributes {stable_mosaic.version = 11 : i64} {
  func.func @avg_readout_kernel(%arg0: i32, %arg1: i32, %arg2: memref<8x128xbf16, #tpu.memory_space<vmem>>, %arg3: memref<128x128xf32, #tpu.memory_space<vmem>>, %arg4: memref<8x128xf32, #tpu.memory_space<vmem>>, %arg5: memref<8x1xf32, #tpu.memory_space<vmem>>) attributes {dimension_semantics = [#tpu.dimension_semantics<parallel>, #tpu.dimension_semantics<arbitrary>], iteration_bounds = array<i64: 1, 1>, scalar_prefetch = 0 : i64, scratch_operands = 1 : i64, tpu.core_type = #tpu.core_type<tc>, window_params = [{transform_indices = @transform_0, window_bounds = array<i64: 8, 128>}, {transform_indices = @transform_1, window_bounds = array<i64: 128, 128>}, {transform_indices = @transform_2, window_bounds = array<i64: 8, 128>}]} {
    %c0_i32 = arith.constant 0 : i32
    %0 = arith.cmpi eq, %arg1, %c0_i32 : i32
    %1 = arith.extui %0 : i1 to i32
    %c0_i32_0 = arith.constant 0 : i32
    %2 = arith.cmpi ne, %1, %c0_i32_0 : i32
    scf.if %2 {
      %cst_15 = arith.constant 0.000000e+00 : f32
      %18 = vector.broadcast %cst_15 : f32 to vector<8x128xf32>
      %c0_16 = arith.constant 0 : index
      %c0_17 = arith.constant 0 : index
      %19 = vector.load %arg4[%c0_16, %c0_17] : memref<8x128xf32, #tpu.memory_space<vmem>>, vector<8x128xf32>
      tpu.vector_store %arg4[%c0_16, %c0_17], %18 {strides = array<i32>} : memref<8x128xf32, #tpu.memory_space<vmem>>, vector<8x128xf32>,
      %cst_18 = arith.constant 0.000000e+00 : f32
      %20 = vector.broadcast %cst_18 : f32 to vector<8x1xf32>
      %c0_19 = arith.constant 0 : index
      %c0_20 = arith.constant 0 : index
      %21 = vector.load %arg5[%c0_19, %c0_20] : memref<8x1xf32, #tpu.memory_space<vmem>>, vector<8x1xf32>
      tpu.vector_store %arg5[%c0_19, %c0_20], %20 {strides = array<i32>} : memref<8x1xf32, #tpu.memory_space<vmem>>, vector<8x1xf32>,
    } else {
    }
    %c0 = arith.constant 0 : index
    %c0_1 = arith.constant 0 : index
    %3 = vector.load %arg2[%c0, %c0_1] : memref<8x128xbf16, #tpu.memory_space<vmem>>, vector<8x128xbf16>
    %4 = arith.extf %3 : vector<8x128xbf16> to vector<8x128xf32>
    %c0_2 = arith.constant 0 : index
    %c0_3 = arith.constant 0 : index
    %5 = vector.load %arg4[%c0_2, %c0_3] : memref<8x128xf32, #tpu.memory_space<vmem>>, vector<8x128xf32>
    %c0_4 = arith.constant 0 : index
    %c0_5 = arith.constant 0 : index
    %6 = vector.load %arg3[%c0_4, %c0_5] : memref<128x128xf32, #tpu.memory_space<vmem>>, vector<128x128xf32>
    %cst = arith.constant dense<0.000000e+00> : vector<8x128xf32>
    %7 = tpu.matmul %4, %6, %cst {dimension_numbers = #tpu.dot_dimension_numbers<[1], [0], [0], [1], [0, 0, 1, 1], [], []>} : vector<8x128xf32>, vector<128x128xf32>, vector<8x128xf32> -> vector<8x128xf32>
    %8 = arith.addf %5, %7 : vector<8x128xf32>
    %c0_6 = arith.constant 0 : index
    %c0_7 = arith.constant 0 : index
    %9 = vector.load %arg4[%c0_6, %c0_7] : memref<8x128xf32, #tpu.memory_space<vmem>>, vector<8x128xf32>
    tpu.vector_store %arg4[%c0_6, %c0_7], %8 {strides = array<i32>} : memref<8x128xf32, #tpu.memory_space<vmem>>, vector<8x128xf32>,
    %c0_8 = arith.constant 0 : index
    %c0_9 = arith.constant 0 : index
    %10 = vector.load %arg5[%c0_8, %c0_9] : memref<8x1xf32, #tpu.memory_space<vmem>>, vector<8x1xf32>
    %cst_10 = arith.constant dense<0.000000e+00> : vector<8xf32>
    %11 = vector.multi_reduction <add>, %4, %cst_10 [1] : vector<8x128xf32> to vector<8xf32>
    %12 = vector.shape_cast %11 : vector<8xf32> to vector<8x1xf32>
    %13 = arith.addf %10, %12 : vector<8x1xf32>
    %c0_11 = arith.constant 0 : index
    %c0_12 = arith.constant 0 : index
    %14 = vector.load %arg5[%c0_11, %c0_12] : memref<8x1xf32, #tpu.memory_space<vmem>>, vector<8x1xf32>
    tpu.vector_store %arg5[%c0_11, %c0_12], %13 {strides = array<i32>} : memref<8x1xf32, #tpu.memory_space<vmem>>, vector<8x1xf32>,
    %c0_i32_13 = arith.constant 0 : i32
    %15 = arith.cmpi eq, %arg1, %c0_i32_13 : i32
    %16 = arith.extui %15 : i1 to i32
    %c0_i32_14 = arith.constant 0 : i32
    %17 = arith.cmpi ne, %16, %c0_i32_14 : i32
    scf.if %17 {
      %c0_15 = arith.constant 0 : index
      %c0_16 = arith.constant 0 : index
      %18 = vector.load %arg5[%c0_15, %c0_16] : memref<8x1xf32, #tpu.memory_space<vmem>>, vector<8x1xf32>
      %cst_17 = arith.constant 1.000000e-30 : f32
      %19 = vector.broadcast %cst_17 : f32 to vector<8x1xf32>
      %20 = arith.maximumf %18, %19 : vector<8x1xf32>
      %21 = tpu.reciprocal %20 {approx = true} : vector<8x1xf32> -> vector<8x1xf32>
      %c0_18 = arith.constant 0 : index
      %c0_19 = arith.constant 0 : index
      %22 = vector.load %arg4[%c0_18, %c0_19] : memref<8x128xf32, #tpu.memory_space<vmem>>, vector<8x128xf32>
      %23 = vector.broadcast %21 : vector<8x1xf32> to vector<8x128xf32>
      %24 = arith.mulf %22, %23 : vector<8x128xf32>
      %25 = arith.mulf %24, %24 : vector<8x128xf32>
      %cst_20 = arith.constant dense<0.000000e+00> : vector<8xf32>
      %26 = vector.multi_reduction <add>, %25, %cst_20 [1] : vector<8x128xf32> to vector<8xf32>
      %27 = vector.shape_cast %26 : vector<8xf32> to vector<8x1xf32>
      %cst_21 = arith.constant 1.000000e-24 : f32
      %28 = vector.broadcast %cst_21 : f32 to vector<8x1xf32>
      %29 = arith.maximumf %27, %28 : vector<8x1xf32>
      %30 = math.rsqrt %29 : vector<8x1xf32>
      %31 = vector.broadcast %30 : vector<8x1xf32> to vector<8x128xf32>
      %32 = arith.mulf %24, %31 : vector<8x128xf32>
      %c0_22 = arith.constant 0 : index
      %c0_23 = arith.constant 0 : index
      %33 = vector.load %arg4[%c0_22, %c0_23] : memref<8x128xf32, #tpu.memory_space<vmem>>, vector<8x128xf32>
      tpu.vector_store %arg4[%c0_22, %c0_23], %32 {strides = array<i32>} : memref<8x128xf32, #tpu.memory_space<vmem>>, vector<8x128xf32>,
    } else {
    }
    return
  }
  func.func @transform_0(%arg0: i32, %arg1: i32) -> (i32, i32) {
    %c0_i32 = arith.constant 0 : i32
    return %arg0, %arg1 : i32, i32
  }
  func.func @transform_1(%arg0: i32, %arg1: i32) -> (i32, i32) {
    %c0_i32 = arith.constant 0 : i32
    %c0_i32_0 = arith.constant 0 : i32
    return %arg1, %c0_i32 : i32, i32
  }
  func.func @transform_2(%arg0: i32, %arg1: i32) -> (i32, i32) {
    %c0_i32 = arith.constant 0 : i32
    %c0_i32_0 = arith.constant 0 : i32
    return %arg0, %c0_i32 : i32, i32
  }
}

</mosaic_0001>

<llo_original>
// kernel: tpu_custom_call.1
$region0: #{tpu_custom_call.1}
  #allocation0 [shape = 'u32[]', space=smem, size = 0x4, offset = 0x4, fixed_abs, tag = 'smem constant byte address 0x4 - core index']
  #allocation1 [shape = 'u32[144,128]{1,0:T(1,128)}', space=vmem, size = 0x12000, scoped, tag = 'internal scratch']
  #allocation2 [shape = 'f32[8,1]{1,0:T(8,128)}', space=vmem, size = 0x1000, scoped, tag = 'scratch operand']
  %s0 = inlined_call_operand.hbm [shape: bf16[8,128], index: 0, kind: input, shape index: {}]
  %s1 = inlined_call_operand.hbm [shape: f32[128,128], index: 1, kind: input, shape index: {}]
  %s2 = inlined_call_operand.hbm [shape: f32[8,128], index: 2, kind: output, shape index: {}]
  %s3 = sld [smem:[#allocation0]]
  $region34: #{tpu_custom_call.1} parent=0
    _
  %s5 = ssub.s32 1, %s3
  %s6 = scalar_select 0, %s5, %s3
  $region1: #{tpu_custom_call.1} parent=0
    #allocation3 [shape = 'u8[2048]{0}', space=vmem, size = 0x800, scoped, tag = 'input window, operand 0, single buffered']
    #allocation4 [shape = 's32[1]{0}', space=sflag, size = 0x4, scoped, tag = 'scoped memory for tpu_custom_call.1']
    #allocation5 [shape = 's32[1]{0}', space=sflag, size = 0x4, scoped, tag = 'scoped memory for tpu_custom_call.1']
    #allocation6 [shape = 'u8[65536]{0}', space=vmem, size = 0x10000, scoped, tag = 'input window, operand 1, single buffered']
    #allocation7 [shape = 's32[1]{0}', space=sflag, size = 0x4, scoped, tag = 'scoped memory for tpu_custom_call.1']
    #allocation8 [shape = 'u8[4096]{0}', space=vmem, size = 0x1000, scoped, tag = 'output window, operand 0, single buffered']
    %7 = vsyncpa [#allocation4], 0
    %8 = vsyncpa [#allocation7], 0
    %9 = vsyncpa [#allocation5], 0
    // Predicated region
    $region2: #{tpu_custom_call.1} parent=1 // pred_check
      _
    $region3: #{tpu_custom_call.1} parent=1 // pred_check_branch
      %11 = sbr.rel (0) target = $region5
    $region4: #{tpu_custom_call.1} parent=1 // pred_region
      %s13 = ssub.s32 64, 64
      %14 = vsyncadd [#allocation4], %s13
      %s16 = sshll.u32 [#allocation3], 4
      %s17 = int_to_ptr.vmem [resolvable:$true] %s16
      %19 = dma.hbm_to_vmem [thread:$0]  %s0, 64, %s17, [#allocation4]
    $region5: #{tpu_custom_call.1} parent=1 // pred_fallthru
      _
    // Predicated region
    $region6: #{tpu_custom_call.1} parent=1 // pred_check
      _
    $region7: #{tpu_custom_call.1} parent=1 // pred_check_branch
      %21 = sbr.rel (0) target = $region9
    $region8: #{tpu_custom_call.1} parent=1 // pred_region
      %s23 = ssub.s32 2048, 2048
      %24 = vsyncadd [#allocation7], %s23
      %s25 = sshll.u32 [#allocation6], 4
      %s26 = int_to_ptr.vmem [resolvable:$true] %s25
      %31 = dma.hbm_to_vmem [thread:$0]  %s1, 2048, %s26, [#allocation7], 128, 128, 8
    $region9: #{tpu_custom_call.1} parent=1 // pred_fallthru
      _
    // Predicated region
    $region10: #{tpu_custom_call.1} parent=1 // pred_check
      _
    $region11: #{tpu_custom_call.1} parent=1 // pred_check_branch
      %33 = sbr.rel (0) target = $region13
    $region12: #{tpu_custom_call.1} parent=1 // pred_region
      %34 = dma.done [#allocation4], 64
    $region13: #{tpu_custom_call.1} parent=1 // pred_fallthru
      _
    // Predicated region
    $region14: #{tpu_custom_call.1} parent=1 // pred_check
      _
    $region15: #{tpu_custom_call.1} parent=1 // pred_check_branch
      %36 = sbr.rel (0) target = $region17
    $region16: #{tpu_custom_call.1} parent=1 // pred_region
      %37 = dma.done [#allocation7], 2048
    $region17: #{tpu_custom_call.1} parent=1 // pred_fallthru
      _
    %p38 = scmp.eq.s32.totalorder 0, 0
    // Predicated region
    $region18: #{tpu_custom_call.1} parent=1 // pred_check
      %p39 = pneg %p38
    $region19: #{tpu_custom_call.1} parent=1 // pred_check_branch
      %41 = sbr.rel (%p39) target = $region21
    $region20: #{tpu_custom_call.1} parent=1 // pred_region
      %42 = vst [vmem:[#allocation8] sm:$0xff] 0.0
      %vm43 = vcmask 7168
      %44 = vst.msk [vmem:[#allocation2] sm:$0xff] %vm43, 0.0
    $region21: #{tpu_custom_call.1} parent=1 // pred_fallthru
      _
    %v45 = vld [vmem:[#allocation3] sm:$0xf]
    %v46 = vunpack.c.l.bf16 %v45
    %v47 = vld [vmem:[#allocation8] sm:$0xff]
    %v48 = vld [vmem:[#allocation6] sm:$0xff]
    %v49 = vld [vmem:[#allocation6 + $0x8] sm:$0xff]
    %v50 = vld [vmem:[#allocation6 + $0x10] sm:$0xff]
    %v51 = vld [vmem:[#allocation6 + $0x18] sm:$0xff]
    %v52 = vld [vmem:[#allocation6 + $0x20] sm:$0xff]
    %v53 = vld [vmem:[#allocation6 + $0x28] sm:$0xff]
    %v54 = vld [vmem:[#allocation6 + $0x30] sm:$0xff]
    %v55 = vld [vmem:[#allocation6 + $0x38] sm:$0xff]
    %v56 = vld [vmem:[#allocation6 + $0x40] sm:$0xff]
    %v57 = vld [vmem:[#allocation6 + $0x48] sm:$0xff]
    %v58 = vld [vmem:[#allocation6 + $0x50] sm:$0xff]
    %v59 = vld [vmem:[#allocation6 + $0x58] sm:$0xff]
    %v60 = vld [vmem:[#allocation6 + $0x60] sm:$0xff]
    %v61 = vld [vmem:[#allocation6 + $0x68] sm:$0xff]
    %v62 = vld [vmem:[#allocation6 + $0x70] sm:$0xff]
    %v63 = vld [vmem:[#allocation6 + $0x78] sm:$0xff]
    %64 = vmatprep.subr.mxu0 0.0
    %65 = vmatpush1.msra.mxu0 %v48
    %66 = vmatprep.subr.mxu0 0.0
    %67 = vmatpush1.msra.mxu0 %v49
    %68 = vmatprep.subr.mxu0 0.0
    %69 = vmatpush1.msra.mxu0 %v50
    %70 = vmatprep.subr.mxu0 0.0
    %71 = vmatpush1.msra.mxu0 %v51
    %72 = vmatprep.subr.mxu0 0.0
    %73 = vmatpush1.msra.mxu0 %v52
    %74 = vmatprep.subr.mxu0 0.0
    %75 = vmatpush1.msra.mxu0 %v53
    %76 = vmatprep.subr.mxu0 0.0
    %77 = vmatpush1.msra.mxu0 %v54
    %78 = vmatprep.subr.mxu0 0.0
    %79 = vmatpush1.msra.mxu0 %v55
    %80 = vmatprep.subr.mxu0 0.0
    %81 = vmatpush1.msra.mxu0 %v56
    %82 = vmatprep.subr.mxu0 0.0
    %83 = vmatpush1.msra.mxu0 %v57
    %84 = vmatprep.subr.mxu0 0.0
    %85 = vmatpush1.msra.mxu0 %v58
    %86 = vmatprep.subr.mxu0 0.0
    %87 = vmatpush1.msra.mxu0 %v59
    %88 = vmatprep.subr.mxu0 0.0
    %89 = vmatpush1.msra.mxu0 %v60
    %90 = vmatprep.subr.mxu0 0.0
    %91 = vmatpush1.msra.mxu0 %v61
    %92 = vmatprep.subr.mxu0 0.0
    %93 = vmatpush1.msra.mxu0 %v62
    %94 = vmatprep.subr.mxu0 0.0
    %95 = vmatpush1.msra.mxu0 %v63
    %96 = vmatprep.subr.mxu0 0.0
    %97 = vmatpush1.msra.mxu0 0.0
    %98 = vmatprep.subr.mxu0 0.0
    %99 = vmatpush1.msra.mxu0 0.0
    %100 = vmatprep.subr.mxu0 0.0
    %101 = vmatpush1.msra.mxu0 0.0
    %102 = vmatprep.subr.mxu0 0.0
    %103 = vmatpush1.msra.mxu0 0.0
    %104 = vmatprep.subr.mxu0 0.0
    %105 = vmatpush1.msra.mxu0 0.0
    %106 = vmatprep.subr.mxu0 0.0
    %107 = vmatpush1.msra.mxu0 0.0
    %108 = vmatprep.subr.mxu0 0.0
    %109 = vmatpush1.msra.mxu0 0.0
    %110 = vmatprep.subr.mxu0 0.0
    %111 = vmatpush1.msra.mxu0 0.0
    %112 = vmatprep.subr.mxu0 0.0
    %113 = vmatpush1.msra.mxu0 0.0
    %114 = vmatprep.subr.mxu0 0.0
    %115 = vmatpush1.msra.mxu0 0.0
    %116 = vmatprep.subr.mxu0 0.0
    %117 = vmatpush1.msra.mxu0 0.0
    %118 = vmatprep.subr.mxu0 0.0
    %119 = vmatpush1.msra.mxu0 0.0
    %120 = vmatprep.subr.mxu0 0.0
    %121 = vmatpush1.msra.mxu0 0.0
    %122 = vmatprep.subr.mxu0 0.0
    %123 = vmatpush1.msra.mxu0 0.0
    %124 = vmatprep.subr.mxu0 0.0
    %125 = vmatpush1.msra.mxu0 0.0
    %126 = vmatprep.subr.mxu0 0.0
    %127 = vmatpush1.msra.mxu0 0.0
    %128 = vmatprep.mubr.f32.mxu0 0.0
    %129 = vmatmul.mubr.f32.gmra.mrb[0].mxu0 %v46
    %v130 = vpop.f32.mrb[0].mxu0
    %v131 = vadd.f32 0.0, %v130
    %v132 = vpop.f32.mrb[0].mxu0
    %133 = vdwg.mxu0
    %v134 = vadd.f32 %v47, %v131
    %135 = vst [vmem:[#allocation8] sm:$0xff] %v134
    %v136 = vld [vmem:[#allocation2] sm:$0xff]
    %137 = vadd.xlane.f32.xlu0 %v46
    %v138 = vpop.xlane.xlu0 %137
    %v139 = vadd.f32 %v136, %v138
    %vm140 = vcmask 7168
    %141 = vst.msk [vmem:[#allocation2] sm:$0xff] %vm140, %v139
    // Predicated region
    $region22: #{tpu_custom_call.1} parent=1 // pred_check
      %p142 = pneg %p38
    $region23: #{tpu_custom_call.1} parent=1 // pred_check_branch
      %144 = sbr.rel (%p142) target = $region25
    $region24: #{tpu_custom_call.1} parent=1 // pred_region
      %v145 = vld [vmem:[#allocation2] sm:$0xff]
      %v146 = vmax.f32 %v145, 1e-30
      %v147 = vrcp.pop %v146
      %v148 = vld [vmem:[#allocation8] sm:$0xff]
      %150 = vset.pattern.permute.xlu0 0
      %151 = vperm.xlu0 %150, %v147
      %v152 = vpop.permute.xlu0 %151
      %v154 = vmul.f32 %v148, %v152
      %v155 = vmul.f32 %v154, %v154
      %156 = vadd.xlane.f32.xlu0 %v155
      %v157 = vpop.xlane.xlu0 %156
      %v158 = vmax.f32 %v157, 1e-24
      %v159 = vrsqrt.pop %v158
      %v160 = vmul.f32 %v154, %v159
      %161 = vst [vmem:[#allocation8] sm:$0xff] %v160
    $region25: #{tpu_custom_call.1} parent=1 // pred_fallthru
      _
    // Predicated region
    $region26: #{tpu_custom_call.1} parent=1 // pred_check
      _
    $region27: #{tpu_custom_call.1} parent=1 // pred_check_branch
      %163 = sbr.rel (0) target = $region29
    $region28: #{tpu_custom_call.1} parent=1 // pred_region
      %s165 = ssub.s32 128, 128
      %166 = vsyncadd [#allocation5], %s165
      %s168 = sshll.u32 [#allocation8], 4
      %s169 = int_to_ptr.vmem [resolvable:$true] %s168
      %171 = dma.vmem_to_hbm [thread:$0]  %s169, 128, %s2, [#allocation5]
    $region29: #{tpu_custom_call.1} parent=1 // pred_fallthru
      _
    // Predicated region
    $region30: #{tpu_custom_call.1} parent=1 // pred_check
      _
    $region31: #{tpu_custom_call.1} parent=1 // pred_check_branch
      %173 = sbr.rel (0) target = $region33
    $region32: #{tpu_custom_call.1} parent=1 // pred_region
      %174 = dma.done [#allocation5], 128
    $region33: #{tpu_custom_call.1} parent=1 // pred_fallthru
      _
    %175 = vsyncpa [#allocation4], 1
    %176 = vsyncpa [#allocation7], 1
    %177 = vsyncpa [#allocation5], 1

</llo_original>
